<compile_context>
chip_gen: v6e
topology: v6e:2x2x1
jax: 0.10.0
libtpu: 0.0.40
codegen_flags: <defaults>
</compile_context>

<pallas_src>
import jax
import jax.numpy as jnp
from jax.experimental import pallas as pl
from jax.experimental.pallas import tpu as pltpu


def pos_emb_add_kernel(emb_ref, w_ref, x_ref, o_ref):
    # emb_ref: (tS, d_low) f32   -- rows of the position-embedding table
    # w_ref:   (d_low, D)  f32   -- up-projection weight (already transposed)
    # x_ref / o_ref: (tS, D)     -- batch dim squeezed out by the BlockSpec
    pe = jnp.dot(emb_ref[...], w_ref[...], preferred_element_type=jnp.float32)
    o_ref[...] = (x_ref[...].astype(jnp.float32) + pe).astype(o_ref.dtype)


def _choose_seq_tile(S, D, x_itemsize, B):
    """Pick tS such that:
      * tS divides S and is a multiple of the packed-sublane count
        (8 for 32-bit, 16 for 16-bit, 32 for 8-bit x), or equals S (fallback);
      * total double-buffered VMEM (x + out tiles, 2 buffers each) stays under
        ~12 MiB, safe inside every generation's default scoped-VMEM limit
        (v5e 16 MiB, v6e/v7x 32 MiB) with headroom for the tiny emb/W blocks;
      * the grid has >= 4 points when possible (v7x megacore + pipelining).
    """
    sub = max(8, 32 // max(1, x_itemsize))       # sublane row multiple for x's dtype
    budget_total = 12 << 20                      # bytes for all double-buffered tiles
    per_row = 4 * D * x_itemsize                 # x + out, 2 buffers each
    cap = max(sub, (budget_total // per_row) // sub * sub)

    tS = min(S, cap)
    tS = (tS // sub) * sub
    while tS >= sub and S % tS != 0:
        tS -= sub
    if tS < sub:
        return S                                 # full-extent block (always layout-legal)

    # Degenerate-grid guard: try to keep >= 4 grid points (best effort).
    while tS > sub and B * (S // tS) < 4:
        cand = tS - sub
        while cand >= sub and S % cand != 0:
            cand -= sub
        if cand < sub:
            break
        tS = cand
    return tS


def gpt2_position_embedding(x, emb_table, up_proj_w, *, donate_x=False):
    """x: (B, S, D)
       emb_table: (seq_max_len, D//8)   -- nn.Embedding.weight
       up_proj_w: (D, D//8)             -- nn.Linear.weight (PyTorch layout)
       donate_x: alias x to the output ONLY if the caller actually donates x.
    """
    B, S, D = x.shape
    seq_max_len, d_low = emb_table.shape
    assert S <= seq_max_len, "seq_len exceeds seq_max_len"
    assert up_proj_w.shape == (D, d_low)

    # Tiny one-time preps (XLA): slice the first S rows (== lookup of arange(S))
    # and transpose W to (d_low, D) so the in-kernel dot is lane-dense in D.
    emb_rows = emb_table[:S].astype(jnp.float32)          # (S, d_low)
    w_t = up_proj_w.astype(jnp.float32).T                 # (d_low, D)

    x_itemsize = jnp.dtype(x.dtype).itemsize
    tS = _choose_seq_tile(S, D, x_itemsize, B)
    grid = (S // tS, B)                                    # b innermost: emb/W blocks revisit-stable

    return pl.pallas_call(
        pos_emb_add_kernel,
        out_shape=jax.ShapeDtypeStruct((B, S, D), x.dtype),
        grid_spec=pltpu.PrefetchScalarGridSpec(
            num_scalar_prefetch=0,
            grid=grid,
            in_specs=[
                pl.BlockSpec((tS, d_low), lambda s, b: (s, 0)),             # emb rows (batch-invariant)
                pl.BlockSpec((d_low, D), lambda s, b: (0, 0)),              # W (constant -> fetched once)
                pl.BlockSpec((pl.Squeezed(), tS, D), lambda s, b: (b, s, 0)),  # x tile
            ],
            out_specs=pl.BlockSpec((pl.Squeezed(), tS, D), lambda s, b: (b, s, 0)),
        ),
        input_output_aliases=({2: 0} if donate_x else {}),
        compiler_params=pltpu.CompilerParams(
            dimension_semantics=("parallel", "parallel"),
        ),
    )(emb_rows, w_t, x)


if __name__ == "__main__":
    # Small shapes consistent with the module: batch=2, seq=8, d_model=32 (d_model//8 = 4).
    B, S, D = 2, 8, 32
    seq_max_len = 16
    d_low = D // 8

    key = jax.random.PRNGKey(0)
    kx, ke, kw = jax.random.split(key, 3)

    x = jax.random.normal(kx, (B, S, D), dtype=jnp.float32)
    # Deterministic parameter init matching _reset_parameters (std=0.01 normals).
    emb_table = 0.01 * jax.random.normal(ke, (seq_max_len, d_low), dtype=jnp.float32)
    up_proj_w = 0.01 * jax.random.normal(kw, (D, d_low), dtype=jnp.float32)  # nn.Linear.weight

    # Pure-JAX reference.
    ref = x + (emb_table[:S] @ up_proj_w.T)[None]

    out = gpt2_position_embedding(x, emb_table, up_proj_w)
    out = jax.block_until_ready(out)

    assert out.shape == (B, S, D)
    assert jnp.allclose(out, ref, atol=1e-5, rtol=1e-5)

    print("KERNEL_OK")
</pallas_src>

<mosaic_0001>
module attributes {stable_mosaic.version = 11 : i64} {
  func.func @pos_emb_add_kernel(%arg0: i32, %arg1: i32, %arg2: memref<8x4xf32, #tpu.memory_space<vmem>>, %arg3: memref<4x32xf32, #tpu.memory_space<vmem>>, %arg4: memref<1x8x32xf32, #tpu.memory_space<vmem>>, %arg5: memref<1x8x32xf32, #tpu.memory_space<vmem>>) attributes {dimension_semantics = [#tpu.dimension_semantics<parallel>, #tpu.dimension_semantics<parallel>], iteration_bounds = array<i64: 1, 2>, scalar_prefetch = 0 : i64, scratch_operands = 0 : i64, tpu.core_type = #tpu.core_type<tc>, window_params = [{transform_indices = @transform_0, window_bounds = array<i64: 8, 4>}, {pipeline_mode = #tpu.pipeline_mode<synchronous>, transform_indices = @transform_1, window_bounds = array<i64: 4, 32>}, {transform_indices = @transform_2, window_bounds = array<i64: 1, 8, 32>}, {transform_indices = @transform_3, window_bounds = array<i64: 1, 8, 32>}]} {
    %c0 = arith.constant 0 : index
    %c0_0 = arith.constant 0 : index
    %0 = vector.load %arg2[%c0, %c0_0] : memref<8x4xf32, #tpu.memory_space<vmem>>, vector<8x4xf32>
    %c0_1 = arith.constant 0 : index
    %c0_2 = arith.constant 0 : index
    %1 = vector.load %arg3[%c0_1, %c0_2] : memref<4x32xf32, #tpu.memory_space<vmem>>, vector<4x32xf32>
    %cst = arith.constant dense<0.000000e+00> : vector<8x32xf32>
    %2 = tpu.matmul %0, %1, %cst {dimension_numbers = #tpu.dot_dimension_numbers<[1], [0], [0], [1], [0, 0, 1, 1], [], []>} : vector<8x4xf32>, vector<4x32xf32>, vector<8x32xf32> -> vector<8x32xf32>
    %c0_3 = arith.constant 0 : index
    %c0_4 = arith.constant 0 : index
    %c0_5 = arith.constant 0 : index
    %3 = vector.load %arg4[%c0_3, %c0_4, %c0_5] : memref<1x8x32xf32, #tpu.memory_space<vmem>>, vector<1x8x32xf32>
    %4 = vector.shape_cast %3 : vector<1x8x32xf32> to vector<8x32xf32>
    %5 = arith.addf %4, %2 : vector<8x32xf32>
    %c0_6 = arith.constant 0 : index
    %c0_7 = arith.constant 0 : index
    %c0_8 = arith.constant 0 : index
    %6 = vector.load %arg5[%c0_6, %c0_7, %c0_8] : memref<1x8x32xf32, #tpu.memory_space<vmem>>, vector<1x8x32xf32>
    %7 = vector.shape_cast %6 : vector<1x8x32xf32> to vector<8x32xf32>
    %8 = vector.shape_cast %5 : vector<8x32xf32> to vector<1x8x32xf32>
    tpu.vector_store %arg5[%c0_6, %c0_7, %c0_8], %8 {strides = array<i32>} : memref<1x8x32xf32, #tpu.memory_space<vmem>>, vector<1x8x32xf32>,
    return
  }
  func.func @transform_0(%arg0: i32, %arg1: i32) -> (i32, i32) {
    %c0_i32 = arith.constant 0 : i32
    %c0_i32_0 = arith.constant 0 : i32
    return %arg0, %c0_i32 : i32, i32
  }
  func.func @transform_1(%arg0: i32, %arg1: i32) -> (i32, i32) {
    %c0_i32 = arith.constant 0 : i32
    %c0_i32_0 = arith.constant 0 : i32
    %c0_i32_1 = arith.constant 0 : i32
    return %c0_i32, %c0_i32_0 : i32, i32
  }
  func.func @transform_2(%arg0: i32, %arg1: i32) -> (i32, i32, i32) {
    %c0_i32 = arith.constant 0 : i32
    %c0_i32_0 = arith.constant 0 : i32
    return %arg1, %arg0, %c0_i32 : i32, i32, i32
  }
  func.func @transform_3(%arg0: i32, %arg1: i32) -> (i32, i32, i32) {
    %c0_i32 = arith.constant 0 : i32
    %c0_i32_0 = arith.constant 0 : i32
    return %arg1, %arg0, %c0_i32 : i32, i32, i32
  }
}

</mosaic_0001>

<llo_original>
// kernel: tpu_custom_call.1
$region0: #{tpu_custom_call.1}
  #allocation0 [shape = 'u32[]', space=smem, size = 0x4, offset = 0x4, fixed_abs, tag = 'smem constant byte address 0x4 - core index']
  #allocation1 [shape = 'u32[144,128]{1,0:T(1,128)}', space=vmem, size = 0x12000, scoped, tag = 'internal scratch']
  %s0 = inlined_call_operand.vmem [shape: f32[8,4], index: 0, kind: input, shape index: {}]
  %s1 = inlined_call_operand.vmem [shape: f32[4,32], index: 1, kind: input, shape index: {}]
  %s2 = inlined_call_operand.hbm [shape: f32[2,8,32], index: 2, kind: input, shape index: {}]
  %s3 = inlined_call_operand.hbm [shape: f32[2,8,32], index: 3, kind: output, shape index: {}]
  %s4 = sld [smem:[#allocation0]]
  $region49: #{tpu_custom_call.1} parent=0
    _
  %s6 = ssub.s32 1, %s4
  %s7 = scalar_select 0, %s6, %s4
  $region1: #{tpu_custom_call.1} parent=0
    #allocation2 [shape = 'u8[8192]{0}', space=vmem, size = 0x2000, scoped, tag = 'input window, operand 2']
    #allocation3 [shape = 's32[2]{0}', space=sflag, size = 0x8, scoped, tag = 'scoped memory for tpu_custom_call.1']
    #allocation4 [shape = 's32[2]{0}', space=sflag, size = 0x8, scoped, tag = 'scoped memory for tpu_custom_call.1']
    #allocation5 [shape = 'u8[8192]{0}', space=vmem, size = 0x2000, scoped, tag = 'output window, operand 0']
    %8 = vsyncpa [#allocation3], 0
    %s9 = scalar_lea.sflag [#allocation3], 1
    %10 = vsyncpa %s9, 0
    %11 = vsyncpa [#allocation4], 0
    %s12 = scalar_lea.sflag [#allocation4], 1
    %13 = vsyncpa %s12, 0
    loop: start=0, step=1, limit=4
    $region2: #{tpu_custom_call.1} parent=1 // loop_pre_header
      _
    $region3: #{tpu_custom_call.1} parent=1 // loop_header
      %s15 = sphi 0, %s19
      %p16 = scmp.ge.s32.totalorder %s15, 4
      %s22 = sphi 0, %s34
      %s23 = sphi 0, %s30
      %s24 = sphi 0, %s22
      %s25 = sphi 0, %s23
      %s26 = sphi 0, %s24
      %s27 = sphi 0, %s25
      %s37 = sphi 0, %s39
      %s40 = sphi 0, %s37
      %s41 = sphi 0, %s40
      %s57 = sphi 0, %s41
      %s61 = sphi 0, %s61
      %s63 = sphi 0, %s61
      %s64 = sphi 0, %s63
      %s78 = sphi 0, %s64
      %s86 = sphi 0, %s88
      %s89 = sphi 0, %s86
      %s90 = sphi 0, %s89
      %s106 = sphi 0, %s90
      %s114 = sphi 0, %s116
      %s117 = sphi 0, %s114
      %s118 = sphi 0, %s117
      %s134 = sphi 0, %s118
    $region4: #{tpu_custom_call.1} parent=1 // loop_header_branch
      %18 = sbr.rel (%p16) target = $region8
    $region5: #{tpu_custom_call.1} parent=1 // loop_body
      %s20 = ssub.s32 %s15, 1
      %s21 = ssub.s32 %s15, 2
      %s28 = sadd.s32 1, %s23
      %p29 = scmp.ge.s32.totalorder %s28, 2
      %s30 = scalar_select %p29, 0, %s28
      %s31 = sadd.s32 1, %s22
      %s32 = scalar_select %p29, %s31, %s22
      %p33 = scmp.ge.s32.totalorder %s32, 1
      %s34 = scalar_select %p33, 0, %s32
      %s35 = ssub.s32 %s22, %s34
      %p36 = scmp.eq.s32.totalorder %s35, 0
      %s38 = sadd.s32 %s37, 1
      %s39 = scalar_select %p36, %s37, %s38
      %p42 = pneg %p36
      %p43 = scmp.eq.s32.totalorder %s15, 1
      %p44 = por %p42, %p43
      %p45 = scmp.ne.s32.totalorder %s37, %s40
      %p46 = scmp.eq.s32.totalorder %s15, 0
      %p47 = por %p45, %p46
      %p48 = scmp.ne.s32.totalorder %s37, %s40
      %p49 = scmp.eq.s32.totalorder %s20, 1
      %p50 = por %p48, %p49
      %p51 = scmp.ne.s32.totalorder %s40, %s41
      %p52 = scmp.eq.s32.totalorder %s20, 0
      %p53 = por %p51, %p52
      %p54 = scmp.ne.s32.totalorder %s40, %s41
      %p55 = scmp.eq.s32.totalorder %s21, 1
      %p56 = por %p54, %p55
      %p58 = scmp.ne.s32.totalorder %s41, %s57
      %p59 = scmp.eq.s32.totalorder %s21, 0
      %p60 = por %p58, %p59
      %s62 = sadd.s32 %s61, 1
      %p65 = scmp.eq.s32.totalorder %s15, 1
      %p66 = scmp.ne.s32.totalorder %s61, %s63
      %p67 = scmp.eq.s32.totalorder %s15, 0
      %p68 = por %p66, %p67
      %p69 = scmp.ne.s32.totalorder %s61, %s63
      %p70 = scmp.eq.s32.totalorder %s20, 1
      %p71 = por %p69, %p70
      %p72 = scmp.ne.s32.totalorder %s63, %s64
      %p73 = scmp.eq.s32.totalorder %s20, 0
      %p74 = por %p72, %p73
      %p75 = scmp.ne.s32.totalorder %s63, %s64
      %p76 = scmp.eq.s32.totalorder %s21, 1
      %p77 = por %p75, %p76
      %p79 = scmp.ne.s32.totalorder %s64, %s78
      %p80 = scmp.eq.s32.totalorder %s21, 0
      %p81 = por %p79, %p80
      %s82 = ssub.s32 %s23, %s30
      %s83 = ssub.s32 %s22, %s34
      %s84 = sor.u32 %s82, %s83
      %p85 = scmp.eq.s32.totalorder %s84, 0
      %s87 = sadd.s32 %s86, 1
      %s88 = scalar_select %p85, %s86, %s87
      %p91 = pneg %p85
      %p92 = scmp.eq.s32.totalorder %s15, 1
      %p93 = por %p91, %p92
      %p94 = scmp.ne.s32.totalorder %s86, %s89
      %p95 = scmp.eq.s32.totalorder %s15, 0
      %p96 = por %p94, %p95
      %p97 = scmp.ne.s32.totalorder %s86, %s89
      %p98 = scmp.eq.s32.totalorder %s20, 1
      %p99 = por %p97, %p98
      %p100 = scmp.ne.s32.totalorder %s89, %s90
      %p101 = scmp.eq.s32.totalorder %s20, 0
      %p102 = por %p100, %p101
      %p103 = scmp.ne.s32.totalorder %s89, %s90
      %p104 = scmp.eq.s32.totalorder %s21, 1
      %p105 = por %p103, %p104
      %p107 = scmp.ne.s32.totalorder %s90, %s106
      %p108 = scmp.eq.s32.totalorder %s21, 0
      %p109 = por %p107, %p108
      %s110 = ssub.s32 %s23, %s30
      %s111 = ssub.s32 %s22, %s34
      %s112 = sor.u32 %s110, %s111
      %p113 = scmp.eq.s32.totalorder %s112, 0
      %s115 = sadd.s32 %s114, 1
      %s116 = scalar_select %p113, %s114, %s115
      %p119 = pneg %p113
      %p120 = scmp.eq.s32.totalorder %s15, 1
      %p121 = por %p119, %p120
      %p122 = scmp.ne.s32.totalorder %s114, %s117
      %p123 = scmp.eq.s32.totalorder %s15, 0
      %p124 = por %p122, %p123
      %p125 = scmp.ne.s32.totalorder %s114, %s117
      %p126 = scmp.eq.s32.totalorder %s20, 1
      %p127 = por %p125, %p126
      %p128 = scmp.ne.s32.totalorder %s117, %s118
      %p129 = scmp.eq.s32.totalorder %s20, 0
      %p130 = por %p128, %p129
      %p131 = scmp.ne.s32.totalorder %s117, %s118
      %p132 = scmp.eq.s32.totalorder %s21, 1
      %p133 = por %p131, %p132
      %p135 = scmp.ne.s32.totalorder %s118, %s134
      %p136 = scmp.eq.s32.totalorder %s21, 0
      %p137 = por %p135, %p136
      %p138 = scmp.le.s32.totalorder 1, %s15
      %p139 = scmp.lt.s32.totalorder %s15, 3
      %p140 = pnand %p138, %p139
      %p141 = pneg %p140
      // Predicated region
      $region9: #{tpu_custom_call.1} parent=5 // pred_check
        _
      $region10: #{tpu_custom_call.1} parent=5 // pred_check_branch
        %143 = sbr.rel (%p140) target = $region12
      $region11: #{tpu_custom_call.1} parent=5 // pred_region
        %s144 = ssub.s32 %s15, 1
        // Predicated region
        $region13: #{tpu_custom_call.1} parent=11 // pred_check
          %p145 = pneg %p53
        $region14: #{tpu_custom_call.1} parent=11 // pred_check_branch
          %147 = sbr.rel (%p145) target = $region16
        $region15: #{tpu_custom_call.1} parent=11 // pred_region
          %p148 = scmp.lt.s32.totalorder %s24, 0
          %s149 = scalar_select %p148, %s24, 0
          %s150 = smul.addr %s149, 8
          %s151 = scalar_lea.vmem %s0, %s150
        $region16: #{tpu_custom_call.1} parent=11 // pred_fallthru
          _
        // Predicated region
        $region17: #{tpu_custom_call.1} parent=11 // pred_check
          %p152 = pneg %p74
        $region18: #{tpu_custom_call.1} parent=11 // pred_check_branch
          %154 = sbr.rel (%p152) target = $region20
        $region19: #{tpu_custom_call.1} parent=11 // pred_region
          _
        $region20: #{tpu_custom_call.1} parent=11 // pred_fallthru
          _
      $region12: #{tpu_custom_call.1} parent=5 // pred_fallthru
        _
      %p155 = scmp.lt.s32.totalorder %s15, 2
      // Predicated region
      $region21: #{tpu_custom_call.1} parent=5 // pred_check
        %p156 = pneg %p155
      $region22: #{tpu_custom_call.1} parent=5 // pred_check_branch
        %158 = sbr.rel (%p156) target = $region24
      $region23: #{tpu_custom_call.1} parent=5 // pred_region
        // Predicated region
        $region25: #{tpu_custom_call.1} parent=23 // pred_check
          %p159 = pneg %p96
        $region26: #{tpu_custom_call.1} parent=23 // pred_check_branch
          %161 = sbr.rel (%p159) target = $region28
        $region27: #{tpu_custom_call.1} parent=23 // pred_region
          %s162 = sand.u32 %s86, 1
          %s163 = scalar_lea.sflag [#allocation3], %s162
          %s164 = sand.u32 %s86, 1
          %s165 = smul.addr %s164, 8
          %s166 = scalar_lea.vmem [#allocation2], %s165
          %s168 = ssub.s32 128, 128
          %169 = vsyncadd %s163, %s168
          %s170 = sadd.s32 %s22, %s23
          %s171 = smul.addr %s170, 128
          %s172 = scalar_lea.hbm %s2, %s171
          %s174 = sshll.u32 %s166, 4
          %s175 = int_to_ptr.vmem [resolvable:$true] %s174
          %177 = dma.hbm_to_vmem [thread:$0]  %s172, 128, %s175, %s163
        $region28: #{tpu_custom_call.1} parent=23 // pred_fallthru
          _
      $region24: #{tpu_custom_call.1} parent=5 // pred_fallthru
        _
      %p178 = scmp.le.s32.totalorder 1, %s15
      %p179 = scmp.lt.s32.totalorder %s15, 3
      %p180 = pnand %p178, %p179
      %p181 = pneg %p180
      // Predicated region
      $region29: #{tpu_custom_call.1} parent=5 // pred_check
        _
      $region30: #{tpu_custom_call.1} parent=5 // pred_check_branch
        %183 = sbr.rel (%p180) target = $region32
      $region31: #{tpu_custom_call.1} parent=5 // pred_region
        %s184 = ssub.s32 %s15, 1
        %s185 = sand.u32 %s89, 1
        %s186 = scalar_lea.sflag [#allocation3], %s185
        %s187 = sand.u32 %s89, 1
        %s188 = smul.addr %s187, 8
        %s189 = scalar_lea.vmem [#allocation2], %s188
        // Predicated region
        $region33: #{tpu_custom_call.1} parent=31 // pred_check
          %p190 = pneg %p102
        $region34: #{tpu_custom_call.1} parent=31 // pred_check_branch
          %192 = sbr.rel (%p190) target = $region36
        $region35: #{tpu_custom_call.1} parent=31 // pred_region
          %193 = dma.done %s186, 128
        $region36: #{tpu_custom_call.1} parent=31 // pred_fallthru
          _
        %p194 = scmp.lt.s32.totalorder %s24, 0
        %s195 = scalar_select %p194, %s24, 0
        %s196 = smul.addr %s195, 8
        %s197 = scalar_lea.vmem %s0, %s196
        %p198 = pneg %p53
        %p199 = pneg %p50
        %p200 = pneg %p74
        %p201 = pneg %p71
        %s202 = sand.u32 %s89, 1
        %s203 = scalar_lea.sflag [#allocation3], %s202
        %s204 = sand.u32 %s89, 1
        %s205 = smul.addr %s204, 8
        %s206 = scalar_lea.vmem [#allocation2], %s205
        %p207 = pneg %p102
        %p208 = pneg %p99
        %p209 = pneg %p130
        %p210 = pneg %p127
        %s211 = sand.u32 %s117, 1
        %s212 = scalar_lea.sflag [#allocation4], %s211
        %s213 = sand.u32 %s117, 1
        %s214 = smul.addr %s213, 8
        %s215 = scalar_lea.vmem [#allocation5], %s214
        %p216 = scmp.lt.s32.totalorder %s24, 0
        %s217 = scalar_select %p216, %s24, 0
        %s218 = smul.addr %s217, 8
        %s219 = scalar_lea.vmem %s0, %s218
        %v220 = vld [vmem:[%s219] sm:$0xff]
        %v221 = vld [vmem:[%s1] sm:$0xf]
        %vm222 = vcmask 31744
        %v224 = vsel %vm222, %v220, 0
        %vm226 = vcmask 1043456
        %v228 = vsel %vm226, %v221, 0
        %230 = vmatprep.subr.mxu0 0.0
        %231 = vmatpush1.msra.mxu0 0.0
        %232 = vmatprep.subr.mxu0 0.0
        %233 = vmatpush1.msra.mxu0 0.0
        %234 = vmatprep.subr.mxu0 0.0
        %235 = vmatpush1.msra.mxu0 0.0
        %236 = vmatprep.subr.mxu0 0.0
        %237 = vmatpush1.msra.mxu0 0.0
        %238 = vmatprep.subr.mxu0 0.0
        %239 = vmatpush1.msra.mxu0 0.0
        %240 = vmatprep.subr.mxu0 0.0
        %241 = vmatpush1.msra.mxu0 0.0
        %242 = vmatprep.subr.mxu0 0.0
        %243 = vmatpush1.msra.mxu0 0.0
        %244 = vmatprep.subr.mxu0 0.0
        %245 = vmatpush1.msra.mxu0 0.0
        %246 = vmatprep.subr.mxu0 0.0
        %247 = vmatpush1.msra.mxu0 0.0
        %248 = vmatprep.subr.mxu0 0.0
        %249 = vmatpush1.msra.mxu0 0.0
        %250 = vmatprep.subr.mxu0 0.0
        %251 = vmatpush1.msra.mxu0 0.0
        %252 = vmatprep.subr.mxu0 0.0
        %253 = vmatpush1.msra.mxu0 0.0
        %254 = vmatprep.subr.mxu0 0.0
        %255 = vmatpush1.msra.mxu0 0.0
        %256 = vmatprep.subr.mxu0 0.0
        %257 = vmatpush1.msra.mxu0 0.0
        %258 = vmatprep.subr.mxu0 0.0
        %259 = vmatpush1.msra.mxu0 0.0
        %260 = vmatprep.subr.mxu0 0.0
        %261 = vmatpush1.msra.mxu0 %v228
        %262 = vmatprep.subr.mxu0 0.0
        %263 = vmatpush2.msra.mxu0 0.0
        %264 = vmatprep.subr.mxu0 0.0
        %265 = vmatpush2.msra.mxu0 0.0
        %266 = vmatprep.subr.mxu0 0.0
        %267 = vmatpush2.msra.mxu0 0.0
        %268 = vmatprep.subr.mxu0 0.0
        %269 = vmatpush2.msra.mxu0 0.0
        %270 = vmatprep.subr.mxu0 0.0
        %271 = vmatpush2.msra.mxu0 0.0
        %272 = vmatprep.subr.mxu0 0.0
        %273 = vmatpush2.msra.mxu0 0.0
        %274 = vmatprep.subr.mxu0 0.0
        %275 = vmatpush2.msra.mxu0 0.0
        %276 = vmatprep.subr.mxu0 0.0
        %277 = vmatpush2.msra.mxu0 0.0
        %278 = vmatprep.subr.mxu0 0.0
        %279 = vmatpush2.msra.mxu0 0.0
        %280 = vmatprep.subr.mxu0 0.0
        %281 = vmatpush2.msra.mxu0 0.0
        %282 = vmatprep.subr.mxu0 0.0
        %283 = vmatpush2.msra.mxu0 0.0
        %284 = vmatprep.subr.mxu0 0.0
        %285 = vmatpush2.msra.mxu0 0.0
        %286 = vmatprep.subr.mxu0 0.0
        %287 = vmatpush2.msra.mxu0 0.0
        %288 = vmatprep.subr.mxu0 0.0
        %289 = vmatpush2.msra.mxu0 0.0
        %290 = vmatprep.subr.mxu0 0.0
        %291 = vmatpush2.msra.mxu0 0.0
        %292 = vmatprep.subr.mxu0 0.0
        %293 = vmatpush2.msra.mxu0 0.0
        %294 = vmatprep.mubr.f32.mxu0 0.0
        %295 = vmatmul.mubr.f32.gmra.mxu0 %v224
        %v296 = vpop.f32.mrf.mxu0
        %v297 = vadd.f32 0.0, %v296
        %v298 = vpop.f32.mrf.mxu0
        %299 = vdwg.mxu0
        %v300 = vld [vmem:[%s189] sm:$0xff]
        %v301 = vadd.f32 %v300, %v297
        %vm302 = vcmask 261120
        %303 = vst.msk [vmem:[%s215] sm:$0xff] %vm302, %v301
        %s304 = sand.u32 %s117, 1
        %s305 = scalar_lea.sflag [#allocation4], %s304
        %s306 = sand.u32 %s117, 1
        %s307 = smul.addr %s306, 8
        %s308 = scalar_lea.vmem [#allocation5], %s307
        // Predicated region
        $region37: #{tpu_custom_call.1} parent=31 // pred_check
          %p309 = pneg %p127
        $region38: #{tpu_custom_call.1} parent=31 // pred_check_branch
          %311 = sbr.rel (%p309) target = $region40
        $region39: #{tpu_custom_call.1} parent=31 // pred_region
          %s313 = ssub.s32 128, 128
          %314 = vsyncadd %s305, %s313
          %s315 = sadd.s32 %s24, %s25
          %s316 = smul.addr %s315, 128
          %s317 = scalar_lea.hbm %s3, %s316
          %s319 = sshll.u32 %s308, 4
          %s320 = int_to_ptr.vmem [resolvable:$true] %s319
          %322 = dma.vmem_to_hbm [thread:$0]  %s320, 128, %s317, %s305
        $region40: #{tpu_custom_call.1} parent=31 // pred_fallthru
          _
      $region32: #{tpu_custom_call.1} parent=5 // pred_fallthru
        _
      %p323 = scmp.le.s32.totalorder 2, %s15
      // Predicated region
      $region41: #{tpu_custom_call.1} parent=5 // pred_check
        %p324 = pneg %p323
      $region42: #{tpu_custom_call.1} parent=5 // pred_check_branch
        %326 = sbr.rel (%p324) target = $region44
      $region43: #{tpu_custom_call.1} parent=5 // pred_region
        %s327 = ssub.s32 %s15, 2
        // Predicated region
        $region45: #{tpu_custom_call.1} parent=43 // pred_check
          %p328 = pneg %p133
        $region46: #{tpu_custom_call.1} parent=43 // pred_check_branch
          %330 = sbr.rel (%p328) target = $region48
        $region47: #{tpu_custom_call.1} parent=43 // pred_region
          %s331 = sand.u32 %s118, 1
          %s332 = scalar_lea.sflag [#allocation4], %s331
          %s333 = sand.u32 %s118, 1
          %s334 = smul.addr %s333, 8
          %s335 = scalar_lea.vmem [#allocation5], %s334
          %336 = dma.done %s332, 128
        $region48: #{tpu_custom_call.1} parent=43 // pred_fallthru
          _
      $region44: #{tpu_custom_call.1} parent=5 // pred_fallthru
        _
    $region6: #{tpu_custom_call.1} parent=1 // loop_footer
      %s19 = sadd.s32 1, %s15
    $region7: #{tpu_custom_call.1} parent=1 // loop_footer_branch
      %14 = sbr.rel target = $region3
    $region8: #{tpu_custom_call.1} parent=1 // loop_exit
      _
    %337 = vsyncpa [#allocation3], 1
    %s338 = scalar_lea.sflag [#allocation3], 1
    %339 = vsyncpa %s338, 1
    %340 = vsyncpa [#allocation4], 1
    %s341 = scalar_lea.sflag [#allocation4], 1
    %342 = vsyncpa %s341, 1

</llo_original>
